<compile_context>
chip_gen: v7x
topology: tpu7x:2x2x1
jax: 0.10.0
libtpu: 0.0.40
codegen_flags: <defaults>
</compile_context>

<pallas_src>
import functools
import math

import jax
import jax.numpy as jnp
from jax.experimental import pallas as pl
from jax.experimental.pallas import tpu as pltpu

_LANES = 128
_SUBLANES = 8
_MIN_PALLAS_BYTES = 1 << 20          # below this, plain jnp (pallas overhead dominates)
_VMEM_LIMIT = 32 << 20               # safe scoped-VMEM limit on v5e/v6e/v7x
_TILE_VMEM_BUDGET = 20 << 20         # of which: budget for double-buffered tiles
_MIN_GRID_STEPS = 4                  # >=2 per TensorCore on v7x megacore


def _target_tile_bytes():
    """Per-buffer tile-size target; bigger tiles amortize ~0.35us/step overhead."""
    try:
        kind = jax.devices()[0].device_kind.lower()
    except Exception:
        return 2 << 20
    if "v5 lite" in kind or "v5e" in kind or "v5lite" in kind:
        return 1 << 20               # ~0.8 TB/s HBM: 1 MiB already <10% overhead
    if "v6" in kind or "trillium" in kind or "v7" in kind:
        return 4 << 20               # 1.4-3.2 TB/s HBM: need ~4 MiB to hide per-step cost
    return 2 << 20


def _pick_row_tile(num_rows, row_bytes, n_buffered_arrays):
    """Row tile: big (target bytes), sublane-aligned, but keep >= _MIN_GRID_STEPS."""
    if num_rows <= _SUBLANES:
        return num_rows
    target = min(_target_tile_bytes(),
                 _TILE_VMEM_BUDGET // (2 * max(n_buffered_arrays, 1)))
    tm = max(_SUBLANES, target // max(row_bytes, 1))
    tm = min(tm, pl.cdiv(num_rows, _MIN_GRID_STEPS))   # keep the grid multi-step
    tm = min(tm, num_rows)
    tm = max(_SUBLANES, (tm // _SUBLANES) * _SUBLANES)
    return tm


# ----------------------------- kernels ------------------------------------ #

def _bias_act_kernel(h_ref, bias_ref, out_ref, *, use_activation):
    x = h_ref[...] + bias_ref[...]
    if use_activation:
        x = jnp.maximum(x, 0.0)
    out_ref[...] = x.astype(out_ref.dtype)


def _act_kernel(h_ref, out_ref, *, use_activation):
    x = h_ref[...]
    if use_activation:
        x = jnp.maximum(x, 0.0)
    out_ref[...] = x.astype(out_ref.dtype)


def _fused_bias_kernel(idx_ref, h_ref, bias_ref, rin_ref, out_ref, rout_ref,
                       *, use_activation):
    # rin_ref is only present so the repr buffer can be aliased to rout; unused.
    del idx_ref, rin_ref
    x = h_ref[...] + bias_ref[...]
    if use_activation:
        x = jnp.maximum(x, 0.0)
    out_ref[...] = x.astype(out_ref.dtype)
    rout_ref[...] = x.astype(rout_ref.dtype)[None]      # (1, tm, C) slot write


def _fused_nobias_kernel(idx_ref, h_ref, rin_ref, out_ref, rout_ref,
                         *, use_activation):
    del idx_ref, rin_ref
    x = h_ref[...]
    if use_activation:
        x = jnp.maximum(x, 0.0)
    out_ref[...] = x.astype(out_ref.dtype)
    rout_ref[...] = x.astype(rout_ref.dtype)[None]


# ----------------------------- drivers ------------------------------------ #

def _jnp_update(h, bias, use_activation):
    x = h if bias is None else h + bias[None, :]
    if use_activation:
        x = jnp.maximum(x, 0.0)
    return x.astype(h.dtype)


def _node_update_2d(x, bias_row, use_activation):
    """Tiled elementwise pass on x [R, C] (C should be lane-dense)."""
    R, C = x.shape
    tm = _pick_row_tile(R, C * x.dtype.itemsize, n_buffered_arrays=2)
    grid = (pl.cdiv(R, tm),)

    if bias_row is not None:
        kernel = functools.partial(_bias_act_kernel, use_activation=use_activation)
        in_specs = [pl.BlockSpec((tm, C), lambda i: (i, 0)),
                    pl.BlockSpec((1, C), lambda i: (0, 0))]
        args = (x, bias_row)
    else:
        kernel = functools.partial(_act_kernel, use_activation=use_activation)
        in_specs = [pl.BlockSpec((tm, C), lambda i: (i, 0))]
        args = (x,)

    return pl.pallas_call(
        kernel,
        out_shape=jax.ShapeDtypeStruct((R, C), x.dtype),
        grid=grid,
        in_specs=in_specs,
        out_specs=pl.BlockSpec((tm, C), lambda i: (i, 0)),
        compiler_params=pltpu.CompilerParams(
            dimension_semantics=("parallel",),
            vmem_limit_bytes=_VMEM_LIMIT),
    )(*args)


def rgcn_node_update(h, bias=None, activation=True, force_pallas=False):
    """h [N, D] -> optional bias-add + optional ReLU, lane-dense + tiled."""
    if bias is None and not activation:
        return h
    N, D = h.shape
    if not force_pallas and h.size * h.dtype.itemsize < _MIN_PALLAS_BYTES:
        return _jnp_update(h, bias, activation)        # tiny: let XLA fuse it

    if D < _LANES and (bias is None or _LANES % D == 0):
        # Lane-dense repack of the packable prefix; tiny tail runs in jnp.
        r0 = _LANES // math.gcd(D, _LANES)             # rows per 128-lane group
        n0 = (N // r0) * r0
        if n0 > 0:
            head = h[:n0].reshape((n0 * D) // _LANES, _LANES)
            bias_row = (jnp.tile(bias, _LANES // D).reshape(1, _LANES)
                        if bias is not None else None)
            out_head = _node_update_2d(head, bias_row, activation).reshape(n0, D)
            if n0 == N:
                return out_head
            out_tail = _jnp_update(h[n0:], bias, activation)
            return jnp.concatenate([out_head, out_tail], axis=0)

    bias_row = None if bias is None else bias.reshape(1, D)
    return _node_update_2d(h, bias_row, activation)


def rgcn_node_update_fused(h, repr_buffer, layer_idx, bias=None, activation=True,
                           force_pallas=False):
    """Fused epilogue: new_h = act(h + bias) AND repr_buffer[layer_idx] = new_h
    in one HBM pass.  repr_buffer is LAYER-MAJOR [L_max, N, D] (aliased in/out).
    Returns (new_h [N, D], new_buffer [L_max, N, D])."""
    N, D = h.shape
    if repr_buffer.ndim != 3 or repr_buffer.shape[1:] != (N, D):
        raise ValueError("repr_buffer must be layer-major [L_max, N, D]")
    L_max = repr_buffer.shape[0]

    small = h.size * h.dtype.itemsize < _MIN_PALLAS_BYTES
    if (bias is None and not activation) or (small and not force_pallas):
        new_h = _jnp_update(h, bias, activation)
        new_buf = jax.lax.dynamic_update_slice(
            repr_buffer, new_h[None].astype(repr_buffer.dtype), (layer_idx, 0, 0))
        return new_h, new_buf

    layer_idx_arr = jnp.asarray(layer_idx, dtype=jnp.int32).reshape(1)

    can_pack = (D < _LANES and (N * D) % _LANES == 0
                and (bias is None or _LANES % D == 0))
    if can_pack:
        pack = _LANES // D if _LANES % D == 0 else None
        Rp, C = (N * D) // _LANES, _LANES
        h2 = h.reshape(Rp, C)
        buf = repr_buffer.reshape(L_max, Rp, C)
        bias_row = (jnp.tile(bias, pack).reshape(1, C) if bias is not None else None)
    else:
        Rp, C = N, D
        h2 = h
        buf = repr_buffer
        bias_row = None if bias is None else bias.reshape(1, D)

    tm = _pick_row_tile(Rp, C * h.dtype.itemsize, n_buffered_arrays=4)
    grid = (pl.cdiv(Rp, tm),)

    h_spec = pl.BlockSpec((tm, C), lambda i, idx: (i, 0))
    out_spec = pl.BlockSpec((tm, C), lambda i, idx: (i, 0))
    bias_spec = pl.BlockSpec((1, C), lambda i, idx: (0, 0))
    # Slot write: scalar-prefetched layer_idx picks the layer block.
    repr_spec = pl.BlockSpec((1, tm, C), lambda i, idx: (idx[0], i, 0))

    if bias_row is not None:
        kernel = functools.partial(_fused_bias_kernel, use_activation=activation)
        in_specs = [h_spec, bias_spec, repr_spec]
        args = (layer_idx_arr, h2, bias_row, buf)
        aliases = {3: 1}      # flat operand index of buf -> output index of repr
    else:
        kernel = functools.partial(_fused_nobias_kernel, use_activation=activation)
        in_specs = [h_spec, repr_spec]
        args = (layer_idx_arr, h2, buf)
        aliases = {2: 1}

    new_h2, new_buf = pl.pallas_call(
        kernel,
        out_shape=(jax.ShapeDtypeStruct((Rp, C), h.dtype),
                   jax.ShapeDtypeStruct(buf.shape, buf.dtype)),
        grid_spec=pltpu.PrefetchScalarGridSpec(
            num_scalar_prefetch=1,
            grid=grid,
            in_specs=in_specs,
            out_specs=[out_spec, repr_spec],
        ),
        input_output_aliases=aliases,
        compiler_params=pltpu.CompilerParams(
            dimension_semantics=("parallel",),
            vmem_limit_bytes=_VMEM_LIMIT),
    )(*args)

    return new_h2.reshape(N, D), new_buf.reshape(L_max, N, D)


# ----------------------------- module ------------------------------------- #

class RGCNLayerPallas:
    """JAX/Pallas equivalent of RGCNLayer.forward (post-propagate path)."""

    def __init__(self, inp_dim, out_dim, bias=True, activation=True,
                 dropout=0.0, edge_dropout=0.0, is_input_layer=False,
                 no_jk=False, force_pallas=False, key=None):
        self.out_dim = out_dim
        self.use_bias = bool(bias)
        self.activation = bool(activation)
        self.dropout = dropout             # kept 0.0 (deterministic)
        self.edge_dropout = edge_dropout   # Identity when 0.0
        self.is_input_layer = is_input_layer
        self.no_jk = no_jk
        self.force_pallas = force_pallas
        if self.use_bias:
            if key is None:
                key = jax.random.PRNGKey(42)
            gain = float(jnp.sqrt(2.0))    # calculate_gain('relu')
            limit = gain * float(jnp.sqrt(6.0 / (out_dim + out_dim)))
            self.bias = jax.random.uniform(
                key, (out_dim,), minval=-limit, maxval=limit, dtype=jnp.float32)
        else:
            self.bias = None

    def __call__(self, h, prev_repr=None, repr_buffer=None, layer_idx=None):
        """h: [N, out_dim] node features produced by propagate().

        Fast path (recommended for deep stacks): pass a preallocated layer-major
        buffer `repr_buffer` [L_max, N, D] plus `layer_idx`; bias+activation and
        the jumping-knowledge slot write are fused in a single Pallas pass with
        input/output aliasing (donate the buffer under jit for in-place update).
        Default path mirrors the reference: returns (new_h, new_repr) with
        new_repr = concat([prev_repr, new_h[:, None, :]], axis=1)  ([N, L, D]).
        """
        bias = self.bias if self.use_bias else None

        if repr_buffer is not None and layer_idx is not None:
            return rgcn_node_update_fused(h, repr_buffer, layer_idx, bias,
                                          self.activation, self.force_pallas)

        new_h = rgcn_node_update(h, bias, self.activation, self.force_pallas)
        # TODO(synk): dropout > 0 not implemented (rate is 0.0 here).
        if self.is_input_layer or self.no_jk or prev_repr is None:
            new_repr = new_h[:, None, :]                          # [N, 1, D]
        else:
            # Reference semantics (O(N*L*D) re-copy per layer); prefer the
            # repr_buffer fast path for multi-layer stacks.
            new_repr = jnp.concatenate(
                [prev_repr, new_h[:, None, :]], axis=1)           # [N, L+1, D]
        return new_h, new_repr

    @staticmethod
    def repr_to_reference_layout(repr_buffer, num_layers=None):
        """Layer-major buffer [L_max, N, D] -> reference layout [N, L, D]."""
        if num_layers is not None:
            repr_buffer = repr_buffer[:num_layers]
        return jnp.transpose(repr_buffer, (1, 0, 2))


# ----------------------------- demo / check -------------------------------- #

if __name__ == "__main__":
    key = jax.random.PRNGKey(0)
    k1, k2, k3 = jax.random.split(key, 3)

    N, D, L_prev = 256, 32, 2          # small demo shapes
    h = jax.random.normal(k1, (N, D), dtype=jnp.float32)
    prev_repr = jax.random.normal(k2, (N, L_prev, D), dtype=jnp.float32)

    # force_pallas=True so the demo exercises the kernels even at tiny sizes.
    layer = RGCNLayerPallas(D, D, bias=True, activation=True,
                            force_pallas=True, key=k3)
    ref_h = jnp.maximum(h + layer.bias[None, :], 0.0)

    # 1) reference-style path: standalone epilogue kernel + concat
    new_h, new_repr = layer(h, prev_repr=prev_repr)
    jax.block_until_ready(new_h)
    jax.block_until_ready(new_repr)
    assert jnp.allclose(new_h, ref_h, atol=1e-6)
    assert new_repr.shape == (N, L_prev + 1, D)
    assert jnp.allclose(new_repr[:, :L_prev, :], prev_repr)
    assert jnp.allclose(new_repr[:, L_prev, :], ref_h, atol=1e-6)

    # 2) fused fast path: epilogue + jumping-knowledge slot write in one pass
    L_max = L_prev + 1
    prev_lm = jnp.transpose(prev_repr, (1, 0, 2))            # layer-major
    repr_buf = jnp.zeros((L_max, N, D), jnp.float32).at[:L_prev].set(prev_lm)
    new_h2, buf2 = layer(h, repr_buffer=repr_buf, layer_idx=L_prev)
    jax.block_until_ready(new_h2)
    jax.block_until_ready(buf2)
    assert jnp.allclose(new_h2, ref_h, atol=1e-6)
    assert jnp.allclose(buf2[L_prev], ref_h, atol=1e-6)
    assert jnp.allclose(buf2[:L_prev], prev_lm)
    ref_layout = RGCNLayerPallas.repr_to_reference_layout(buf2)
    assert ref_layout.shape == (N, L_max, D)
    assert jnp.allclose(ref_layout, new_repr, atol=1e-6)

    # 3) bias-only and activation-only variants
    layer_noact = RGCNLayerPallas(D, D, bias=True, activation=False,
                                  force_pallas=True, key=k3)
    h_na, _ = layer_noact(h)
    jax.block_until_ready(h_na)
    assert jnp.allclose(h_na, h + layer_noact.bias[None, :], atol=1e-6)

    layer_nb = RGCNLayerPallas(D, D, bias=False, activation=True,
                               force_pallas=True)
    h_nb, _ = layer_nb(h)
    jax.block_until_ready(h_nb)
    assert jnp.allclose(h_nb, jnp.maximum(h, 0.0), atol=1e-6)

    print("KERNEL_OK")
</pallas_src>

<mosaic_0001>
module attributes {stable_mosaic.version = 11 : i64} {
  func.func @_bias_act_kernel(%arg0: i32, %arg1: memref<16x128xf32, #tpu.memory_space<vmem>>, %arg2: memref<1x128xf32, #tpu.memory_space<vmem>>, %arg3: memref<16x128xf32, #tpu.memory_space<vmem>>) attributes {dimension_semantics = [#tpu.dimension_semantics<parallel>], iteration_bounds = array<i64: 4>, scalar_prefetch = 0 : i64, scratch_operands = 0 : i64, tpu.core_type = #tpu.core_type<tc>, window_params = [{transform_indices = @transform_0, window_bounds = array<i64: 16, 128>}, {pipeline_mode = #tpu.pipeline_mode<synchronous>, transform_indices = @transform_1, window_bounds = array<i64: 1, 128>}, {transform_indices = @transform_2, window_bounds = array<i64: 16, 128>}]} {
    %c0 = arith.constant 0 : index
    %c0_0 = arith.constant 0 : index
    %0 = vector.load %arg1[%c0, %c0_0] : memref<16x128xf32, #tpu.memory_space<vmem>>, vector<16x128xf32>
    %c0_1 = arith.constant 0 : index
    %c0_2 = arith.constant 0 : index
    %1 = vector.load %arg2[%c0_1, %c0_2] : memref<1x128xf32, #tpu.memory_space<vmem>>, vector<1x128xf32>
    %2 = vector.broadcast %1 : vector<1x128xf32> to vector<16x128xf32>
    %3 = arith.addf %0, %2 : vector<16x128xf32>
    %cst = arith.constant 0.000000e+00 : f32
    %4 = vector.broadcast %cst : f32 to vector<16x128xf32>
    %5 = arith.maximumf %3, %4 : vector<16x128xf32>
    %c0_3 = arith.constant 0 : index
    %c0_4 = arith.constant 0 : index
    %6 = vector.load %arg3[%c0_3, %c0_4] : memref<16x128xf32, #tpu.memory_space<vmem>>, vector<16x128xf32>
    tpu.vector_store %arg3[%c0_3, %c0_4], %5 {strides = array<i32>} : memref<16x128xf32, #tpu.memory_space<vmem>>, vector<16x128xf32>,
    return
  }
  func.func @transform_0(%arg0: i32) -> (i32, i32) {
    %c0_i32 = arith.constant 0 : i32
    %c0_i32_0 = arith.constant 0 : i32
    return %arg0, %c0_i32 : i32, i32
  }
  func.func @transform_1(%arg0: i32) -> (i32, i32) {
    %c0_i32 = arith.constant 0 : i32
    %c0_i32_0 = arith.constant 0 : i32
    %c0_i32_1 = arith.constant 0 : i32
    return %c0_i32, %c0_i32_0 : i32, i32
  }
  func.func @transform_2(%arg0: i32) -> (i32, i32) {
    %c0_i32 = arith.constant 0 : i32
    %c0_i32_0 = arith.constant 0 : i32
    return %arg0, %c0_i32 : i32, i32
  }
}

</mosaic_0001>

<llo_original>
// kernel: tpu_custom_call.1
$region0: #{tpu_custom_call.1}
  #allocation0 [shape = 'u32[]', space=smem, size = 0x4, offset = 0x4, fixed_abs, tag = 'smem constant byte address 0x4 - core index']
  #allocation1 [shape = 'u32[144,128]{1,0:T(1,128)}', space=vmem, size = 0x12000, scoped, tag = 'internal scratch']
  %s0 = inlined_call_operand.hbm [shape: f32[64,128], index: 0, kind: input, shape index: {}]
  %s1 = inlined_call_operand.vmem [shape: f32[1,128], index: 1, kind: input, shape index: {}]
  %s2 = inlined_call_operand.hbm [shape: f32[64,128], index: 2, kind: output, shape index: {}]
  %s3 = sld [smem:[#allocation0]]
  $region45: #{tpu_custom_call.1} parent=0
    _
  %s5 = ssub.s32 1, %s3
  %s6 = scalar_select 0, %s5, %s3
  $region1: #{tpu_custom_call.1} parent=0
    #allocation2 [shape = 'u8[16384]{0}', space=vmem, size = 0x4000, scoped, tag = 'input window, operand 0']
    #allocation3 [shape = 's32[2]{0}', space=sflag, size = 0x8, scoped, tag = 'scoped memory for tpu_custom_call.1']
    #allocation4 [shape = 's32[2]{0}', space=sflag, size = 0x8, scoped, tag = 'scoped memory for tpu_custom_call.1']
    #allocation5 [shape = 'u8[16384]{0}', space=vmem, size = 0x4000, scoped, tag = 'output window, operand 0']
    %7 = vsyncpa [#allocation3], 0
    %s8 = scalar_lea.sflag [#allocation3], 1
    %9 = vsyncpa %s8, 0
    %10 = vsyncpa [#allocation4], 0
    %s11 = scalar_lea.sflag [#allocation4], 1
    %12 = vsyncpa %s11, 0
    loop: start=0, step=1, limit=6
    $region2: #{tpu_custom_call.1} parent=1 // loop_pre_header
      _
    $region3: #{tpu_custom_call.1} parent=1 // loop_header
      %s14 = sphi 0, %s18
      %p15 = scmp.ge.s32.totalorder %s14, 6
      %s24 = sphi 0, %s26
      %s27 = sphi 0, %s24
      %s28 = sphi 0, %s27
      %s44 = sphi 0, %s28
      %s48 = sphi 0, %s48
      %s50 = sphi 0, %s48
      %s51 = sphi 0, %s50
      %s65 = sphi 0, %s51
      %s71 = sphi 0, %s73
      %s74 = sphi 0, %s71
      %s75 = sphi 0, %s74
      %s91 = sphi 0, %s75
    $region4: #{tpu_custom_call.1} parent=1 // loop_header_branch
      %17 = sbr.rel (%p15) target = $region8
    $region5: #{tpu_custom_call.1} parent=1 // loop_body
      %s19 = ssub.s32 %s14, 1
      %s20 = ssub.s32 %s14, 2
      %s21 = sadd.s32 %s14, 1
      %s22 = ssub.s32 %s14, %s21
      %p23 = scmp.eq.s32.totalorder %s22, 0
      %s25 = sadd.s32 %s24, 1
      %s26 = scalar_select %p23, %s24, %s25
      %p29 = pneg %p23
      %p30 = scmp.eq.s32.totalorder %s14, 3
      %p31 = por %p29, %p30
      %p32 = scmp.ne.s32.totalorder %s24, %s27
      %p33 = scmp.eq.s32.totalorder %s14, 0
      %p34 = por %p32, %p33
      %p35 = scmp.ne.s32.totalorder %s24, %s27
      %p36 = scmp.eq.s32.totalorder %s19, 3
      %p37 = por %p35, %p36
      %p38 = scmp.ne.s32.totalorder %s27, %s28
      %p39 = scmp.eq.s32.totalorder %s19, 0
      %p40 = por %p38, %p39
      %p41 = scmp.ne.s32.totalorder %s27, %s28
      %p42 = scmp.eq.s32.totalorder %s20, 3
      %p43 = por %p41, %p42
      %p45 = scmp.ne.s32.totalorder %s28, %s44
      %p46 = scmp.eq.s32.totalorder %s20, 0
      %p47 = por %p45, %p46
      %s49 = sadd.s32 %s48, 1
      %p52 = scmp.eq.s32.totalorder %s14, 3
      %p53 = scmp.ne.s32.totalorder %s48, %s50
      %p54 = scmp.eq.s32.totalorder %s14, 0
      %p55 = por %p53, %p54
      %p56 = scmp.ne.s32.totalorder %s48, %s50
      %p57 = scmp.eq.s32.totalorder %s19, 3
      %p58 = por %p56, %p57
      %p59 = scmp.ne.s32.totalorder %s50, %s51
      %p60 = scmp.eq.s32.totalorder %s19, 0
      %p61 = por %p59, %p60
      %p62 = scmp.ne.s32.totalorder %s50, %s51
      %p63 = scmp.eq.s32.totalorder %s20, 3
      %p64 = por %p62, %p63
      %p66 = scmp.ne.s32.totalorder %s51, %s65
      %p67 = scmp.eq.s32.totalorder %s20, 0
      %p68 = por %p66, %p67
      %s69 = ssub.s32 %s14, %s21
      %p70 = scmp.eq.s32.totalorder %s69, 0
      %s72 = sadd.s32 %s71, 1
      %s73 = scalar_select %p70, %s71, %s72
      %p76 = pneg %p70
      %p77 = scmp.eq.s32.totalorder %s14, 3
      %p78 = por %p76, %p77
      %p79 = scmp.ne.s32.totalorder %s71, %s74
      %p80 = scmp.eq.s32.totalorder %s14, 0
      %p81 = por %p79, %p80
      %p82 = scmp.ne.s32.totalorder %s71, %s74
      %p83 = scmp.eq.s32.totalorder %s19, 3
      %p84 = por %p82, %p83
      %p85 = scmp.ne.s32.totalorder %s74, %s75
      %p86 = scmp.eq.s32.totalorder %s19, 0
      %p87 = por %p85, %p86
      %p88 = scmp.ne.s32.totalorder %s74, %s75
      %p89 = scmp.eq.s32.totalorder %s20, 3
      %p90 = por %p88, %p89
      %p92 = scmp.ne.s32.totalorder %s75, %s91
      %p93 = scmp.eq.s32.totalorder %s20, 0
      %p94 = por %p92, %p93
      %p95 = scmp.le.s32.totalorder 1, %s14
      %p96 = scmp.lt.s32.totalorder %s14, 5
      %p97 = pnand %p95, %p96
      %p98 = pneg %p97
      // Predicated region
      $region9: #{tpu_custom_call.1} parent=5 // pred_check
        _
      $region10: #{tpu_custom_call.1} parent=5 // pred_check_branch
        %100 = sbr.rel (%p97) target = $region12
      $region11: #{tpu_custom_call.1} parent=5 // pred_region
        %s101 = ssub.s32 %s14, 1
        // Predicated region
        $region13: #{tpu_custom_call.1} parent=11 // pred_check
          %p102 = pneg %p61
        $region14: #{tpu_custom_call.1} parent=11 // pred_check_branch
          %104 = sbr.rel (%p102) target = $region16
        $region15: #{tpu_custom_call.1} parent=11 // pred_region
          _
        $region16: #{tpu_custom_call.1} parent=11 // pred_fallthru
          _
      $region12: #{tpu_custom_call.1} parent=5 // pred_fallthru
        _
      %p105 = scmp.lt.s32.totalorder %s14, 4
      // Predicated region
      $region17: #{tpu_custom_call.1} parent=5 // pred_check
        %p106 = pneg %p105
      $region18: #{tpu_custom_call.1} parent=5 // pred_check_branch
        %108 = sbr.rel (%p106) target = $region20
      $region19: #{tpu_custom_call.1} parent=5 // pred_region
        // Predicated region
        $region21: #{tpu_custom_call.1} parent=19 // pred_check
          %p109 = pneg %p34
        $region22: #{tpu_custom_call.1} parent=19 // pred_check_branch
          %111 = sbr.rel (%p109) target = $region24
        $region23: #{tpu_custom_call.1} parent=19 // pred_region
          %s112 = sand.u32 %s24, 1
          %s113 = scalar_lea.sflag [#allocation3], %s112
          %s114 = sand.u32 %s24, 1
          %s115 = smul.addr %s114, 16
          %s116 = scalar_lea.vmem [#allocation2], %s115
          %s117 = smul.u32 2, %s14
          %s119 = ssub.s32 256, 256
          %120 = vsyncadd %s113, %s119
          %s121 = smul.addr %s117, 128
          %s122 = scalar_lea.hbm %s0, %s121
          %s123 = sshll.u32 %s116, 4
          %s124 = int_to_ptr.vmem [resolvable:$true] %s123
          %129 = dma.hbm_to_vmem [thread:$0]  %s122, 256, %s124, %s113, 128, 128, 8
        $region24: #{tpu_custom_call.1} parent=19 // pred_fallthru
          _
      $region20: #{tpu_custom_call.1} parent=5 // pred_fallthru
        _
      %p130 = scmp.le.s32.totalorder 1, %s14
      %p131 = scmp.lt.s32.totalorder %s14, 5
      %p132 = pnand %p130, %p131
      %p133 = pneg %p132
      // Predicated region
      $region25: #{tpu_custom_call.1} parent=5 // pred_check
        _
      $region26: #{tpu_custom_call.1} parent=5 // pred_check_branch
        %135 = sbr.rel (%p132) target = $region28
      $region27: #{tpu_custom_call.1} parent=5 // pred_region
        %s136 = ssub.s32 %s14, 1
        %s137 = sand.u32 %s27, 1
        %s138 = scalar_lea.sflag [#allocation3], %s137
        %s139 = sand.u32 %s27, 1
        %s140 = smul.addr %s139, 16
        %s141 = scalar_lea.vmem [#allocation2], %s140
        // Predicated region
        $region29: #{tpu_custom_call.1} parent=27 // pred_check
          %p142 = pneg %p40
        $region30: #{tpu_custom_call.1} parent=27 // pred_check_branch
          %144 = sbr.rel (%p142) target = $region32
        $region31: #{tpu_custom_call.1} parent=27 // pred_region
          %145 = dma.done %s138, 256
        $region32: #{tpu_custom_call.1} parent=27 // pred_fallthru
          _
        %s146 = sand.u32 %s27, 1
        %s147 = scalar_lea.sflag [#allocation3], %s146
        %s148 = sand.u32 %s27, 1
        %s149 = smul.addr %s148, 16
        %s150 = scalar_lea.vmem [#allocation2], %s149
        %p151 = pneg %p40
        %p152 = pneg %p37
        %p153 = pneg %p61
        %p154 = pneg %p58
        %p155 = pneg %p87
        %p156 = pneg %p84
        %s157 = sand.u32 %s74, 1
        %s158 = scalar_lea.sflag [#allocation4], %s157
        %s159 = sand.u32 %s74, 1
        %s160 = smul.addr %s159, 16
        %s161 = scalar_lea.vmem [#allocation5], %s160
        %s162 = smul.u32 2, %s19
        %s163 = smul.u32 2, %s19
        %v164 = vld [vmem:[%s141] sm:$0xff]
        %v165 = vld [vmem:[%s141 + $0x8] sm:$0xff]
        %v166 = vld [vmem:[%s1] sm:$0x1]
        %v168 = vlaneseq
        %v169 = vshrl.u32 %v168, 7
        %v170 = vsub.s32 0, %v169
        %v171 = vrot.slane %v166, %v170
        %v173 = vadd.f32 %v164, %v171
        %v174 = vadd.f32 %v165, %v171
        %v175 = vmax.f32 %v173, 0.0
        %v176 = vmax.f32 %v174, 0.0
        %177 = vst [vmem:[%s161] sm:$0xff] %v175
        %178 = vst [vmem:[%s161 + $0x8] sm:$0xff] %v176
        %s179 = sand.u32 %s74, 1
        %s180 = scalar_lea.sflag [#allocation4], %s179
        %s181 = sand.u32 %s74, 1
        %s182 = smul.addr %s181, 16
        %s183 = scalar_lea.vmem [#allocation5], %s182
        // Predicated region
        $region33: #{tpu_custom_call.1} parent=27 // pred_check
          %p184 = pneg %p84
        $region34: #{tpu_custom_call.1} parent=27 // pred_check_branch
          %186 = sbr.rel (%p184) target = $region36
        $region35: #{tpu_custom_call.1} parent=27 // pred_region
          %s187 = smul.u32 2, %s19
          %s189 = ssub.s32 256, 256
          %190 = vsyncadd %s180, %s189
          %s191 = smul.addr %s187, 128
          %s192 = scalar_lea.hbm %s2, %s191
          %s193 = sshll.u32 %s183, 4
          %s194 = int_to_ptr.vmem [resolvable:$true] %s193
          %199 = dma.vmem_to_hbm [thread:$0]  %s194, 256, %s192, %s180, 128, 128, 8
        $region36: #{tpu_custom_call.1} parent=27 // pred_fallthru
          _
      $region28: #{tpu_custom_call.1} parent=5 // pred_fallthru
        _
      %p200 = scmp.le.s32.totalorder 2, %s14
      // Predicated region
      $region37: #{tpu_custom_call.1} parent=5 // pred_check
        %p201 = pneg %p200
      $region38: #{tpu_custom_call.1} parent=5 // pred_check_branch
        %203 = sbr.rel (%p201) target = $region40
      $region39: #{tpu_custom_call.1} parent=5 // pred_region
        %s204 = ssub.s32 %s14, 2
        // Predicated region
        $region41: #{tpu_custom_call.1} parent=39 // pred_check
          %p205 = pneg %p90
        $region42: #{tpu_custom_call.1} parent=39 // pred_check_branch
          %207 = sbr.rel (%p205) target = $region44
        $region43: #{tpu_custom_call.1} parent=39 // pred_region
          %s208 = sand.u32 %s75, 1
          %s209 = scalar_lea.sflag [#allocation4], %s208
          %s210 = sand.u32 %s75, 1
          %s211 = smul.addr %s210, 16
          %s212 = scalar_lea.vmem [#allocation5], %s211
          %213 = dma.done %s209, 256
        $region44: #{tpu_custom_call.1} parent=39 // pred_fallthru
          _
      $region40: #{tpu_custom_call.1} parent=5 // pred_fallthru
        _
    $region6: #{tpu_custom_call.1} parent=1 // loop_footer
      %s18 = sadd.s32 1, %s14
    $region7: #{tpu_custom_call.1} parent=1 // loop_footer_branch
      %13 = sbr.rel target = $region3
    $region8: #{tpu_custom_call.1} parent=1 // loop_exit
      _
    %214 = vsyncpa [#allocation3], 1
    %s215 = scalar_lea.sflag [#allocation3], 1
    %216 = vsyncpa %s215, 1
    %217 = vsyncpa [#allocation4], 1
    %s218 = scalar_lea.sflag [#allocation4], 1
    %219 = vsyncpa %s218, 1

</llo_original>
